<compile_context>
chip_gen: v7x
topology: tpu7x:2x2x1
jax: 0.10.0
libtpu: 0.0.40
codegen_flags: <defaults>
</compile_context>

<pallas_src>
import jax
import jax.numpy as jnp
from jax import lax
from jax.experimental import pallas as pl
from jax.experimental.pallas import tpu as pltpu

# ---- small, module-consistent sizes ----
N = 16                 # number of graph nodes
EMBED = 16             # config.Model.embedding_size
IN_DIM = 3 * EMBED     # linear_input in_features = embedding_size * 3
F = 16                 # config.Model.latency_feature_size
F2 = 2 * F             # GATConv out_feats = latency_feature_size * 2
NEG_SLOPE = 0.2        # DGL GATConv default negative_slope


def _block_diag_stack(adj, num_steps, bt):
    """(B, N, N) -> (num_steps * bt * N, bt * N): per-step block-diagonal adjacency."""
    a = adj.reshape(num_steps, bt, N, N)
    eye = jnp.eye(bt, dtype=adj.dtype)
    bd = jnp.einsum("sgrc,gh->sgrhc", a, eye)          # zero outside own graph block
    return bd.reshape(num_steps * bt * N, bt * N)


def level_latency_encoder(embed, adj, params, *, num_steps=2):
    """Batched forward.  embed: (B, N, 3E), adj: (B, N, N) bidirected dense mask."""
    B = embed.shape[0]
    assert embed.shape == (B, N, IN_DIM) and adj.shape == (B, N, N)
    assert B % num_steps == 0, "batch must divide evenly into grid steps"
    bt = B // num_steps
    mb = bt * N                                        # rows per grid step

    # Host-side fusion of GATConv fc with attn_l / attn_r -> one matmul in-kernel.
    w_big = jnp.concatenate(
        [params["wgt"],
         params["wgt"] @ params["attn_l"],
         params["wgt"] @ params["attn_r"]], axis=1)    # (F, F2+2)

    embed_flat = embed.reshape(B * N, IN_DIM)          # contiguous per-step input DMA
    adj_bd = _block_diag_stack(adj, num_steps, bt)     # (num_steps*mb, mb)

    def kernel(embed_ref, adj_ref, w1t_ref, b1_ref, wbig_ref, biasg_ref, y_ref):
        # ---- linear_input + ReLU over all bt*N nodes of this step ----
        x = jnp.dot(embed_ref[...], w1t_ref[...],
                    preferred_element_type=jnp.float32) + b1_ref[...]
        x = jnp.maximum(x, 0.0)                                     # (mb, F)

        # ---- fused GAT fc + attention projections: [feat | feat@a_l | feat@a_r]
        feat_ext = jnp.dot(x, wbig_ref[...],
                           preferred_element_type=jnp.float32)      # (mb, F2+2)
        feat = feat_ext[:, :F2]                                     # (mb, 2F)
        el = feat_ext[:, F2:F2 + 1]                                 # (mb, 1) source term
        er = feat_ext[:, F2 + 1:F2 + 2]                             # (mb, 1) dest term

        # ---- attention logits: e[i, j] = leaky_relu(er[i] + el[j]); i=dst, j=src
        # Lane-broadcast el then a tile-aligned square XLU transpose (no MXU pass).
        el_mat = jnp.transpose(jnp.broadcast_to(el, (mb, mb)))      # el[j] in column j
        e = er + el_mat
        e = jnp.where(e > 0, e, NEG_SLOPE * e)                      # LeakyReLU(0.2)

        # ---- block-diagonal masked edge softmax (per dst row) ----
        mask = adj_ref[...] > 0
        e = jnp.where(mask, e, jnp.float32(-1e30))
        m = jnp.max(e, axis=-1, keepdims=True)
        p = jnp.where(mask, jnp.exp(e - m), 0.0)
        denom = jnp.sum(p, axis=-1, keepdims=True)
        # guard: an all-masked row (isolated node) yields alpha == 0, not NaN
        alpha = p / jnp.maximum(denom, jnp.float32(1e-30))          # (mb, mb)

        # ---- aggregate messages (one MXU pass for all graphs in the step) ----
        y = jnp.dot(alpha, feat,
                    preferred_element_type=jnp.float32) + biasg_ref[...]  # (mb, 2F)

        # ---- single lane-dense slab store: [mu | tanh(logvar)] ----
        col = lax.broadcasted_iota(jnp.int32, (mb, F2), 1)
        y_ref[...] = jnp.where(col < F, y, jnp.tanh(y))

    y = pl.pallas_call(
        kernel,
        grid=(num_steps,),
        in_specs=[pl.BlockSpec((mb, IN_DIM), lambda s: (s, 0)),   # embeddings (per step)
                  pl.BlockSpec((mb, mb), lambda s: (s, 0)),       # block-diag adjacency
                  pl.BlockSpec((IN_DIM, F), lambda s: (0, 0)),    # w1t   (shared)
                  pl.BlockSpec((1, F), lambda s: (0, 0)),         # b1    (shared)
                  pl.BlockSpec((F, F2 + 2), lambda s: (0, 0)),    # fused GAT weights
                  pl.BlockSpec((1, F2), lambda s: (0, 0))],       # GAT bias
        out_specs=pl.BlockSpec((mb, F2), lambda s: (s, 0)),
        out_shape=jax.ShapeDtypeStruct((B * N, F2), jnp.float32),
        compiler_params=pltpu.CompilerParams(
            dimension_semantics=("parallel",)),  # 2 steps -> both TCs on v7x
    )(embed_flat, adj_bd, params["w1t"], params["b1"], w_big, params["bias_g"])

    y = y.reshape(B, N, F2)
    return y[..., :F], y[..., F:]


def reference_single(embed, adj, params):
    """Pure-JAX reference of the same forward pass (single graph)."""
    x = jax.nn.relu(embed @ params["w1t"] + params["b1"])
    feat = x @ params["wgt"]
    el = feat @ params["attn_l"]          # (N, 1)
    er = feat @ params["attn_r"]          # (N, 1)
    e = er + el.T
    e = jnp.where(e > 0, e, NEG_SLOPE * e)
    e = jnp.where(adj > 0, e, -1e30)
    m = jnp.max(e, axis=-1, keepdims=True)
    p = jnp.where(adj > 0, jnp.exp(e - m), 0.0)
    alpha = p / jnp.sum(p, axis=-1, keepdims=True)
    y = alpha @ feat + params["bias_g"]
    return y[:, :F], jnp.tanh(y[:, F:])


def make_params(key):
    ks = jax.random.split(key, 6)
    scale = 0.1
    return {
        # linear_input: nn.Linear(3*E, F) -> pass W^T (3E, F) and bias (1, F)
        "w1t": scale * jax.random.normal(ks[0], (IN_DIM, F), jnp.float32),
        "b1": scale * jax.random.normal(ks[1], (1, F), jnp.float32),
        # GATConv fc: Linear(F, 2F, bias=False) -> pass W^T (F, 2F)
        "wgt": scale * jax.random.normal(ks[2], (F, F2), jnp.float32),
        # GATConv attn_l / attn_r: (1, heads=1, 2F) -> pass as columns (2F, 1)
        "attn_l": scale * jax.random.normal(ks[3], (F2, 1), jnp.float32),
        "attn_r": scale * jax.random.normal(ks[4], (F2, 1), jnp.float32),
        # GATConv bias: (heads * 2F,) -> pass as (1, 2F)
        "bias_g": scale * jax.random.normal(ks[5], (1, F2), jnp.float32),
    }


def make_bidirected_adj_batch(batch):
    """Per-graph ring + a per-graph chord, symmetric (== dgl.to_bidirected).
    Every node has in-degree >= 1 as GATConv requires."""
    base = jnp.zeros((N, N), jnp.float32)
    for i in range(N):
        j = (i + 1) % N
        base = base.at[i, j].set(1.0).at[j, i].set(1.0)
    adjs = []
    for b in range(batch):
        c = 2 + (b % (N - 4))
        adjs.append(base.at[0, c].set(1.0).at[c, 0].set(1.0))
    return jnp.stack(adjs)


if __name__ == "__main__":
    key = jax.random.PRNGKey(0)
    k_embed, k_params = jax.random.split(key)

    B = 16                                      # -> 2 grid steps of 128 rows each
    embed = jax.random.normal(k_embed, (B, N, IN_DIM), jnp.float32)
    adj = make_bidirected_adj_batch(B)
    params = make_params(k_params)

    mu, logvar = level_latency_encoder(embed, adj, params, num_steps=2)
    jax.block_until_ready((mu, logvar))

    mu_ref, logvar_ref = jax.vmap(reference_single, in_axes=(0, 0, None))(
        embed, adj, params)
    assert mu.shape == (B, N, F) and logvar.shape == (B, N, F)
    assert jnp.allclose(mu, mu_ref, atol=1e-4, rtol=1e-4)
    assert jnp.allclose(logvar, logvar_ref, atol=1e-4, rtol=1e-4)

    print("KERNEL_OK")
</pallas_src>

<mosaic_0001>
module attributes {stable_mosaic.version = 11 : i64} {
  func.func @kernel(%arg0: i32, %arg1: memref<128x48xf32, #tpu.memory_space<vmem>>, %arg2: memref<128x128xf32, #tpu.memory_space<vmem>>, %arg3: memref<48x16xf32, #tpu.memory_space<vmem>>, %arg4: memref<1x16xf32, #tpu.memory_space<vmem>>, %arg5: memref<16x34xf32, #tpu.memory_space<vmem>>, %arg6: memref<1x32xf32, #tpu.memory_space<vmem>>, %arg7: memref<128x32xf32, #tpu.memory_space<vmem>>) attributes {dimension_semantics = [#tpu.dimension_semantics<parallel>], iteration_bounds = array<i64: 2>, scalar_prefetch = 0 : i64, scratch_operands = 0 : i64, tpu.core_type = #tpu.core_type<tc>, window_params = [{transform_indices = @transform_0, window_bounds = array<i64: 128, 48>}, {transform_indices = @transform_1, window_bounds = array<i64: 128, 128>}, {pipeline_mode = #tpu.pipeline_mode<synchronous>, transform_indices = @transform_2, window_bounds = array<i64: 48, 16>}, {pipeline_mode = #tpu.pipeline_mode<synchronous>, transform_indices = @transform_3, window_bounds = array<i64: 1, 16>}, {pipeline_mode = #tpu.pipeline_mode<synchronous>, transform_indices = @transform_4, window_bounds = array<i64: 16, 34>}, {pipeline_mode = #tpu.pipeline_mode<synchronous>, transform_indices = @transform_5, window_bounds = array<i64: 1, 32>}, {transform_indices = @transform_6, window_bounds = array<i64: 128, 32>}]} {
    %c0 = arith.constant 0 : index
    %c0_0 = arith.constant 0 : index
    %0 = vector.load %arg1[%c0, %c0_0] : memref<128x48xf32, #tpu.memory_space<vmem>>, vector<128x48xf32>
    %c0_1 = arith.constant 0 : index
    %c0_2 = arith.constant 0 : index
    %1 = vector.load %arg3[%c0_1, %c0_2] : memref<48x16xf32, #tpu.memory_space<vmem>>, vector<48x16xf32>
    %cst = arith.constant dense<0.000000e+00> : vector<128x16xf32>
    %2 = tpu.matmul %0, %1, %cst {dimension_numbers = #tpu.dot_dimension_numbers<[1], [0], [0], [1], [0, 0, 1, 1], [], []>} : vector<128x48xf32>, vector<48x16xf32>, vector<128x16xf32> -> vector<128x16xf32>
    %c0_3 = arith.constant 0 : index
    %c0_4 = arith.constant 0 : index
    %3 = vector.load %arg4[%c0_3, %c0_4] : memref<1x16xf32, #tpu.memory_space<vmem>>, vector<1x16xf32>
    %4 = vector.broadcast %3 : vector<1x16xf32> to vector<128x16xf32>
    %5 = arith.addf %2, %4 : vector<128x16xf32>
    %cst_5 = arith.constant 0.000000e+00 : f32
    %6 = vector.broadcast %cst_5 : f32 to vector<128x16xf32>
    %7 = arith.maximumf %5, %6 : vector<128x16xf32>
    %c0_6 = arith.constant 0 : index
    %c0_7 = arith.constant 0 : index
    %8 = vector.load %arg5[%c0_6, %c0_7] : memref<16x34xf32, #tpu.memory_space<vmem>>, vector<16x34xf32>
    %cst_8 = arith.constant dense<0.000000e+00> : vector<128x34xf32>
    %9 = tpu.matmul %7, %8, %cst_8 {dimension_numbers = #tpu.dot_dimension_numbers<[1], [0], [0], [1], [0, 0, 1, 1], [], []>} : vector<128x16xf32>, vector<16x34xf32>, vector<128x34xf32> -> vector<128x34xf32>
    %10 = vector.extract_strided_slice %9 {offsets = [0, 0], sizes = [128, 32], strides = [1, 1]} : vector<128x34xf32> to vector<128x32xf32>
    %11 = vector.extract_strided_slice %9 {offsets = [0, 32], sizes = [128, 1], strides = [1, 1]} : vector<128x34xf32> to vector<128x1xf32>
    %12 = vector.extract_strided_slice %9 {offsets = [0, 33], sizes = [128, 1], strides = [1, 1]} : vector<128x34xf32> to vector<128x1xf32>
    %13 = vector.shape_cast %11 : vector<128x1xf32> to vector<128x1xf32>
    %14 = vector.broadcast %13 : vector<128x1xf32> to vector<128x128xf32>
    %15 = tpu.transpose %14, [1, 0] : vector<128x128xf32> -> vector<128x128xf32>
    %16 = vector.broadcast %12 : vector<128x1xf32> to vector<128x128xf32>
    %17 = arith.addf %16, %15 : vector<128x128xf32>
    %cst_9 = arith.constant 0.000000e+00 : f32
    %18 = vector.broadcast %cst_9 : f32 to vector<128x128xf32>
    %19 = arith.cmpf ogt, %17, %18 : vector<128x128xf32>
    %cst_10 = arith.constant 2.000000e-01 : f32
    %20 = vector.broadcast %cst_10 : f32 to vector<128x128xf32>
    %21 = arith.mulf %20, %17 : vector<128x128xf32>
    %22 = arith.select %19, %17, %21 : vector<128x128xi1>, vector<128x128xf32>
    %c0_11 = arith.constant 0 : index
    %c0_12 = arith.constant 0 : index
    %23 = vector.load %arg2[%c0_11, %c0_12] : memref<128x128xf32, #tpu.memory_space<vmem>>, vector<128x128xf32>
    %cst_13 = arith.constant 0.000000e+00 : f32
    %24 = vector.broadcast %cst_13 : f32 to vector<128x128xf32>
    %25 = arith.cmpf ogt, %23, %24 : vector<128x128xf32>
    %cst_14 = arith.constant -1.000000e+30 : f32
    %26 = vector.broadcast %cst_14 : f32 to vector<128x128xf32>
    %27 = arith.select %25, %22, %26 : vector<128x128xi1>, vector<128x128xf32>
    %cst_15 = arith.constant dense<0xFF800000> : vector<128xf32>
    %28 = vector.multi_reduction <maximumf>, %27, %cst_15 [1] : vector<128x128xf32> to vector<128xf32>
    %29 = vector.shape_cast %28 : vector<128xf32> to vector<128x1xf32>
    %30 = vector.broadcast %29 : vector<128x1xf32> to vector<128x128xf32>
    %31 = arith.subf %27, %30 : vector<128x128xf32>
    %32 = math.exp %31 : vector<128x128xf32>
    %cst_16 = arith.constant 0.000000e+00 : f32
    %33 = vector.broadcast %cst_16 : f32 to vector<128x128xf32>
    %34 = arith.select %25, %32, %33 : vector<128x128xi1>, vector<128x128xf32>
    %cst_17 = arith.constant dense<0.000000e+00> : vector<128xf32>
    %35 = vector.multi_reduction <add>, %34, %cst_17 [1] : vector<128x128xf32> to vector<128xf32>
    %36 = vector.shape_cast %35 : vector<128xf32> to vector<128x1xf32>
    %cst_18 = arith.constant 1.000000e-30 : f32
    %37 = vector.broadcast %cst_18 : f32 to vector<128x1xf32>
    %38 = arith.maximumf %36, %37 : vector<128x1xf32>
    %39 = vector.broadcast %38 : vector<128x1xf32> to vector<128x128xf32>
    %40 = arith.divf %34, %39 : vector<128x128xf32>
    %cst_19 = arith.constant dense<0.000000e+00> : vector<128x32xf32>
    %41 = tpu.matmul %40, %10, %cst_19 {dimension_numbers = #tpu.dot_dimension_numbers<[1], [0], [0], [1], [0, 0, 1, 1], [], []>} : vector<128x128xf32>, vector<128x32xf32>, vector<128x32xf32> -> vector<128x32xf32>
    %c0_20 = arith.constant 0 : index
    %c0_21 = arith.constant 0 : index
    %42 = vector.load %arg6[%c0_20, %c0_21] : memref<1x32xf32, #tpu.memory_space<vmem>>, vector<1x32xf32>
    %43 = vector.broadcast %42 : vector<1x32xf32> to vector<128x32xf32>
    %44 = arith.addf %41, %43 : vector<128x32xf32>
    %45 = tpu.iota {dimensions = array<i32: 1>} : vector<128x32xi32>
    %c16_i32 = arith.constant 16 : i32
    %46 = vector.broadcast %c16_i32 : i32 to vector<128x32xi32>
    %47 = arith.cmpi slt, %45, %46 : vector<128x32xi32>
    %48 = math.tanh %44 : vector<128x32xf32>
    %49 = arith.select %47, %44, %48 : vector<128x32xi1>, vector<128x32xf32>
    %c0_22 = arith.constant 0 : index
    %c0_23 = arith.constant 0 : index
    %50 = vector.load %arg7[%c0_22, %c0_23] : memref<128x32xf32, #tpu.memory_space<vmem>>, vector<128x32xf32>
    tpu.vector_store %arg7[%c0_22, %c0_23], %49 {strides = array<i32>} : memref<128x32xf32, #tpu.memory_space<vmem>>, vector<128x32xf32>,
    return
  }
  func.func @transform_0(%arg0: i32) -> (i32, i32) {
    %c0_i32 = arith.constant 0 : i32
    %c0_i32_0 = arith.constant 0 : i32
    return %arg0, %c0_i32 : i32, i32
  }
  func.func @transform_1(%arg0: i32) -> (i32, i32) {
    %c0_i32 = arith.constant 0 : i32
    %c0_i32_0 = arith.constant 0 : i32
    return %arg0, %c0_i32 : i32, i32
  }
  func.func @transform_2(%arg0: i32) -> (i32, i32) {
    %c0_i32 = arith.constant 0 : i32
    %c0_i32_0 = arith.constant 0 : i32
    %c0_i32_1 = arith.constant 0 : i32
    return %c0_i32, %c0_i32_0 : i32, i32
  }
  func.func @transform_3(%arg0: i32) -> (i32, i32) {
    %c0_i32 = arith.constant 0 : i32
    %c0_i32_0 = arith.constant 0 : i32
    %c0_i32_1 = arith.constant 0 : i32
    return %c0_i32, %c0_i32_0 : i32, i32
  }
  func.func @transform_4(%arg0: i32) -> (i32, i32) {
    %c0_i32 = arith.constant 0 : i32
    %c0_i32_0 = arith.constant 0 : i32
    %c0_i32_1 = arith.constant 0 : i32
    return %c0_i32, %c0_i32_0 : i32, i32
  }
  func.func @transform_5(%arg0: i32) -> (i32, i32) {
    %c0_i32 = arith.constant 0 : i32
    %c0_i32_0 = arith.constant 0 : i32
    %c0_i32_1 = arith.constant 0 : i32
    return %c0_i32, %c0_i32_0 : i32, i32
  }
  func.func @transform_6(%arg0: i32) -> (i32, i32) {
    %c0_i32 = arith.constant 0 : i32
    %c0_i32_0 = arith.constant 0 : i32
    return %arg0, %c0_i32 : i32, i32
  }
}

</mosaic_0001>

<llo_original>
// kernel: tpu_custom_call.1
$region0: #{tpu_custom_call.1}
  #allocation0 [shape = 'u32[]', space=smem, size = 0x4, offset = 0x4, fixed_abs, tag = 'smem constant byte address 0x4 - core index']
  #allocation1 [shape = 'u32[144,128]{1,0:T(1,128)}', space=vmem, size = 0x12000, scoped, tag = 'internal scratch']
  %s0 = inlined_call_operand.vmem [shape: f32[256,48], index: 0, kind: input, shape index: {}]
  %s1 = inlined_call_operand.vmem [shape: f32[256,128], index: 1, kind: input, shape index: {}]
  %s2 = inlined_call_operand.vmem [shape: f32[48,16], index: 2, kind: input, shape index: {}]
  %s3 = inlined_call_operand.vmem [shape: f32[1,16], index: 3, kind: input, shape index: {}]
  %s4 = inlined_call_operand.vmem [shape: f32[16,34], index: 4, kind: input, shape index: {}]
  %s5 = inlined_call_operand.vmem [shape: f32[1,32], index: 5, kind: input, shape index: {}]
  %s6 = inlined_call_operand.vmem [shape: f32[256,32], index: 6, kind: output, shape index: {}]
  %s7 = sld [smem:[#allocation0]]
  $region57: #{tpu_custom_call.1} parent=0
    _
  %s9 = ssub.s32 1, %s7
  %s10 = scalar_select 0, %s9, %s7
  loop: start=0, step=1, limit=4
  $region2: #{tpu_custom_call.1} parent=0 // loop_pre_header
    _
  $region3: #{tpu_custom_call.1} parent=0 // loop_header
    %s12 = sphi 0, %s16
    %p13 = scmp.ge.s32.totalorder %s12, 4
    %s22 = sphi 0, %s24
    %s25 = sphi 0, %s22
    %s26 = sphi 0, %s25
    %s42 = sphi 0, %s26
    %s48 = sphi 0, %s50
    %s51 = sphi 0, %s48
    %s52 = sphi 0, %s51
    %s68 = sphi 0, %s52
    %s72 = sphi 0, %s72
    %s74 = sphi 0, %s72
    %s75 = sphi 0, %s74
    %s89 = sphi 0, %s75
    %s93 = sphi 0, %s93
    %s95 = sphi 0, %s93
    %s96 = sphi 0, %s95
    %s110 = sphi 0, %s96
    %s114 = sphi 0, %s114
    %s116 = sphi 0, %s114
    %s117 = sphi 0, %s116
    %s131 = sphi 0, %s117
    %s135 = sphi 0, %s135
    %s137 = sphi 0, %s135
    %s138 = sphi 0, %s137
    %s152 = sphi 0, %s138
    %s158 = sphi 0, %s160
    %s161 = sphi 0, %s158
    %s162 = sphi 0, %s161
    %s178 = sphi 0, %s162
  $region4: #{tpu_custom_call.1} parent=0 // loop_header_branch
    %15 = sbr.rel (%p13) target = $region8
  $region5: #{tpu_custom_call.1} parent=0 // loop_body
    %s17 = ssub.s32 %s12, 1
    %s18 = ssub.s32 %s12, 2
    %s19 = sadd.s32 %s12, 1
    %s20 = ssub.s32 %s12, %s19
    %p21 = scmp.eq.s32.totalorder %s20, 0
    %s23 = sadd.s32 %s22, 1
    %s24 = scalar_select %p21, %s22, %s23
    %p27 = pneg %p21
    %p28 = scmp.eq.s32.totalorder %s12, 1
    %p29 = por %p27, %p28
    %p30 = scmp.ne.s32.totalorder %s22, %s25
    %p31 = scmp.eq.s32.totalorder %s12, 0
    %p32 = por %p30, %p31
    %p33 = scmp.ne.s32.totalorder %s22, %s25
    %p34 = scmp.eq.s32.totalorder %s17, 1
    %p35 = por %p33, %p34
    %p36 = scmp.ne.s32.totalorder %s25, %s26
    %p37 = scmp.eq.s32.totalorder %s17, 0
    %p38 = por %p36, %p37
    %p39 = scmp.ne.s32.totalorder %s25, %s26
    %p40 = scmp.eq.s32.totalorder %s18, 1
    %p41 = por %p39, %p40
    %p43 = scmp.ne.s32.totalorder %s26, %s42
    %p44 = scmp.eq.s32.totalorder %s18, 0
    %p45 = por %p43, %p44
    %s46 = ssub.s32 %s12, %s19
    %p47 = scmp.eq.s32.totalorder %s46, 0
    %s49 = sadd.s32 %s48, 1
    %s50 = scalar_select %p47, %s48, %s49
    %p53 = pneg %p47
    %p54 = scmp.eq.s32.totalorder %s12, 1
    %p55 = por %p53, %p54
    %p56 = scmp.ne.s32.totalorder %s48, %s51
    %p57 = scmp.eq.s32.totalorder %s12, 0
    %p58 = por %p56, %p57
    %p59 = scmp.ne.s32.totalorder %s48, %s51
    %p60 = scmp.eq.s32.totalorder %s17, 1
    %p61 = por %p59, %p60
    %p62 = scmp.ne.s32.totalorder %s51, %s52
    %p63 = scmp.eq.s32.totalorder %s17, 0
    %p64 = por %p62, %p63
    %p65 = scmp.ne.s32.totalorder %s51, %s52
    %p66 = scmp.eq.s32.totalorder %s18, 1
    %p67 = por %p65, %p66
    %p69 = scmp.ne.s32.totalorder %s52, %s68
    %p70 = scmp.eq.s32.totalorder %s18, 0
    %p71 = por %p69, %p70
    %s73 = sadd.s32 %s72, 1
    %p76 = scmp.eq.s32.totalorder %s12, 1
    %p77 = scmp.ne.s32.totalorder %s72, %s74
    %p78 = scmp.eq.s32.totalorder %s12, 0
    %p79 = por %p77, %p78
    %p80 = scmp.ne.s32.totalorder %s72, %s74
    %p81 = scmp.eq.s32.totalorder %s17, 1
    %p82 = por %p80, %p81
    %p83 = scmp.ne.s32.totalorder %s74, %s75
    %p84 = scmp.eq.s32.totalorder %s17, 0
    %p85 = por %p83, %p84
    %p86 = scmp.ne.s32.totalorder %s74, %s75
    %p87 = scmp.eq.s32.totalorder %s18, 1
    %p88 = por %p86, %p87
    %p90 = scmp.ne.s32.totalorder %s75, %s89
    %p91 = scmp.eq.s32.totalorder %s18, 0
    %p92 = por %p90, %p91
    %s94 = sadd.s32 %s93, 1
    %p97 = scmp.eq.s32.totalorder %s12, 1
    %p98 = scmp.ne.s32.totalorder %s93, %s95
    %p99 = scmp.eq.s32.totalorder %s12, 0
    %p100 = por %p98, %p99
    %p101 = scmp.ne.s32.totalorder %s93, %s95
    %p102 = scmp.eq.s32.totalorder %s17, 1
    %p103 = por %p101, %p102
    %p104 = scmp.ne.s32.totalorder %s95, %s96
    %p105 = scmp.eq.s32.totalorder %s17, 0
    %p106 = por %p104, %p105
    %p107 = scmp.ne.s32.totalorder %s95, %s96
    %p108 = scmp.eq.s32.totalorder %s18, 1
    %p109 = por %p107, %p108
    %p111 = scmp.ne.s32.totalorder %s96, %s110
    %p112 = scmp.eq.s32.totalorder %s18, 0
    %p113 = por %p111, %p112
    %s115 = sadd.s32 %s114, 1
    %p118 = scmp.eq.s32.totalorder %s12, 1
    %p119 = scmp.ne.s32.totalorder %s114, %s116
    %p120 = scmp.eq.s32.totalorder %s12, 0
    %p121 = por %p119, %p120
    %p122 = scmp.ne.s32.totalorder %s114, %s116
    %p123 = scmp.eq.s32.totalorder %s17, 1
    %p124 = por %p122, %p123
    %p125 = scmp.ne.s32.totalorder %s116, %s117
    %p126 = scmp.eq.s32.totalorder %s17, 0
    %p127 = por %p125, %p126
    %p128 = scmp.ne.s32.totalorder %s116, %s117
    %p129 = scmp.eq.s32.totalorder %s18, 1
    %p130 = por %p128, %p129
    %p132 = scmp.ne.s32.totalorder %s117, %s131
    %p133 = scmp.eq.s32.totalorder %s18, 0
    %p134 = por %p132, %p133
    %s136 = sadd.s32 %s135, 1
    %p139 = scmp.eq.s32.totalorder %s12, 1
    %p140 = scmp.ne.s32.totalorder %s135, %s137
    %p141 = scmp.eq.s32.totalorder %s12, 0
    %p142 = por %p140, %p141
    %p143 = scmp.ne.s32.totalorder %s135, %s137
    %p144 = scmp.eq.s32.totalorder %s17, 1
    %p145 = por %p143, %p144
    %p146 = scmp.ne.s32.totalorder %s137, %s138
    %p147 = scmp.eq.s32.totalorder %s17, 0
    %p148 = por %p146, %p147
    %p149 = scmp.ne.s32.totalorder %s137, %s138
    %p150 = scmp.eq.s32.totalorder %s18, 1
    %p151 = por %p149, %p150
    %p153 = scmp.ne.s32.totalorder %s138, %s152
    %p154 = scmp.eq.s32.totalorder %s18, 0
    %p155 = por %p153, %p154
    %s156 = ssub.s32 %s12, %s19
    %p157 = scmp.eq.s32.totalorder %s156, 0
    %s159 = sadd.s32 %s158, 1
    %s160 = scalar_select %p157, %s158, %s159
    %p163 = pneg %p157
    %p164 = scmp.eq.s32.totalorder %s12, 1
    %p165 = por %p163, %p164
    %p166 = scmp.ne.s32.totalorder %s158, %s161
    %p167 = scmp.eq.s32.totalorder %s12, 0
    %p168 = por %p166, %p167
    %p169 = scmp.ne.s32.totalorder %s158, %s161
    %p170 = scmp.eq.s32.totalorder %s17, 1
    %p171 = por %p169, %p170
    %p172 = scmp.ne.s32.totalorder %s161, %s162
    %p173 = scmp.eq.s32.totalorder %s17, 0
    %p174 = por %p172, %p173
    %p175 = scmp.ne.s32.totalorder %s161, %s162
    %p176 = scmp.eq.s32.totalorder %s18, 1
    %p177 = por %p175, %p176
    %p179 = scmp.ne.s32.totalorder %s162, %s178
    %p180 = scmp.eq.s32.totalorder %s18, 0
    %p181 = por %p179, %p180
    %p182 = scmp.le.s32.totalorder 1, %s12
    %p183 = scmp.lt.s32.totalorder %s12, 3
    %p184 = pnand %p182, %p183
    %p185 = pneg %p184
    // Predicated region
    $region9: #{tpu_custom_call.1} parent=5 // pred_check
      _
    $region10: #{tpu_custom_call.1} parent=5 // pred_check_branch
      %187 = sbr.rel (%p184) target = $region12
    $region11: #{tpu_custom_call.1} parent=5 // pred_region
      %s188 = ssub.s32 %s12, 1
      // Predicated region
      $region13: #{tpu_custom_call.1} parent=11 // pred_check
        %p189 = pneg %p85
      $region14: #{tpu_custom_call.1} parent=11 // pred_check_branch
        %191 = sbr.rel (%p189) target = $region16
      $region15: #{tpu_custom_call.1} parent=11 // pred_region
        _
      $region16: #{tpu_custom_call.1} parent=11 // pred_fallthru
        _
      // Predicated region
      $region17: #{tpu_custom_call.1} parent=11 // pred_check
        %p192 = pneg %p106
      $region18: #{tpu_custom_call.1} parent=11 // pred_check_branch
        %194 = sbr.rel (%p192) target = $region20
      $region19: #{tpu_custom_call.1} parent=11 // pred_region
        _
      $region20: #{tpu_custom_call.1} parent=11 // pred_fallthru
        _
      // Predicated region
      $region21: #{tpu_custom_call.1} parent=11 // pred_check
        %p195 = pneg %p127
      $region22: #{tpu_custom_call.1} parent=11 // pred_check_branch
        %197 = sbr.rel (%p195) target = $region24
      $region23: #{tpu_custom_call.1} parent=11 // pred_region
        _
      $region24: #{tpu_custom_call.1} parent=11 // pred_fallthru
        _
      // Predicated region
      $region25: #{tpu_custom_call.1} parent=11 // pred_check
        %p198 = pneg %p148
      $region26: #{tpu_custom_call.1} parent=11 // pred_check_branch
        %200 = sbr.rel (%p198) target = $region28
      $region27: #{tpu_custom_call.1} parent=11 // pred_region
        _
      $region28: #{tpu_custom_call.1} parent=11 // pred_fallthru
        _
    $region12: #{tpu_custom_call.1} parent=5 // pred_fallthru
      _
    %p201 = scmp.lt.s32.totalorder %s12, 2
    // Predicated region
    $region29: #{tpu_custom_call.1} parent=5 // pred_check
      %p202 = pneg %p201
    $region30: #{tpu_custom_call.1} parent=5 // pred_check_branch
      %204 = sbr.rel (%p202) target = $region32
    $region31: #{tpu_custom_call.1} parent=5 // pred_region
      // Predicated region
      $region33: #{tpu_custom_call.1} parent=31 // pred_check
        %p205 = pneg %p32
      $region34: #{tpu_custom_call.1} parent=31 // pred_check_branch
        %207 = sbr.rel (%p205) target = $region36
      $region35: #{tpu_custom_call.1} parent=31 // pred_region
        %s208 = smul.u32 16, %s12
        %p209 = scmp.lt.s32.totalorder %s208, 31
        %s210 = scalar_select %p209, %s208, 31
        %s211 = smul.addr %s210, 8
        %s212 = scalar_lea.vmem %s0, %s211
        %s213 = smul.u32 16, %s12
      $region36: #{tpu_custom_call.1} parent=31 // pred_fallthru
        _
      // Predicated region
      $region37: #{tpu_custom_call.1} parent=31 // pred_check
        %p214 = pneg %p58
      $region38: #{tpu_custom_call.1} parent=31 // pred_check_branch
        %216 = sbr.rel (%p214) target = $region40
      $region39: #{tpu_custom_call.1} parent=31 // pred_region
        %s217 = smul.u32 16, %s12
        %p218 = scmp.lt.s32.totalorder %s217, 31
        %s219 = scalar_select %p218, %s217, 31
        %s220 = smul.addr %s219, 8
        %s221 = scalar_lea.vmem %s1, %s220
        %s222 = smul.u32 16, %s12
      $region40: #{tpu_custom_call.1} parent=31 // pred_fallthru
        _
    $region32: #{tpu_custom_call.1} parent=5 // pred_fallthru
      _
    %p223 = scmp.le.s32.totalorder 1, %s12
    %p224 = scmp.lt.s32.totalorder %s12, 3
    %p225 = pnand %p223, %p224
    %p226 = pneg %p225
    // Predicated region
    $region41: #{tpu_custom_call.1} parent=5 // pred_check
      _
    $region42: #{tpu_custom_call.1} parent=5 // pred_check_branch
      %228 = sbr.rel (%p225) target = $region44
    $region43: #{tpu_custom_call.1} parent=5 // pred_region
      %s229 = ssub.s32 %s12, 1
      %s230 = smul.u32 16, %s17
      %p231 = scmp.lt.s32.totalorder %s230, 31
      %s232 = scalar_select %p231, %s230, 31
      %s233 = smul.addr %s232, 8
      %s234 = scalar_lea.vmem %s0, %s233
      %p235 = pneg %p38
      %p236 = pneg %p35
      %s237 = smul.u32 16, %s17
      %p238 = scmp.lt.s32.totalorder %s237, 31
      %s239 = scalar_select %p238, %s237, 31
      %s240 = smul.addr %s239, 8
      %s241 = scalar_lea.vmem %s1, %s240
      %p242 = pneg %p64
      %p243 = pneg %p61
      %p244 = pneg %p85
      %p245 = pneg %p82
      %p246 = pneg %p106
      %p247 = pneg %p103
      %p248 = pneg %p127
      %p249 = pneg %p124
      %p250 = pneg %p148
      %p251 = pneg %p145
      %p252 = pneg %p174
      %p253 = pneg %p171
      %s254 = smul.u32 16, %s17
      %p255 = scmp.lt.s32.totalorder %s254, 31
      %s256 = scalar_select %p255, %s254, 31
      %s257 = smul.addr %s256, 8
      %s258 = scalar_lea.vmem %s6, %s257
      %s259 = smul.u32 16, %s17
      %p260 = scmp.lt.s32.totalorder %s259, 31
      %s261 = scalar_select %p260, %s259, 31
      %s262 = smul.addr %s261, 8
      %s263 = scalar_lea.vmem %s0, %s262
      %s264 = smul.u32 16, %s17
      %s265 = smul.u32 16, %s17
      %p266 = scmp.lt.s32.totalorder %s265, 31
      %s267 = scalar_select %p266, %s265, 31
      %s268 = smul.addr %s267, 8
      %s269 = scalar_lea.vmem %s1, %s268
      %s270 = smul.u32 16, %s17
      %s271 = smul.u32 16, %s17
      %p272 = scmp.lt.s32.totalorder %s271, 31
      %s273 = scalar_select %p272, %s271, 31
      %s274 = smul.addr %s273, 8
      %s275 = scalar_lea.vmem %s6, %s274
      %s276 = smul.u32 16, %s17
      %v277 = vld [vmem:[%s263] sm:$0xff]
      %v278 = vld [vmem:[%s263 + $0x8] sm:$0xff]
      %v279 = vld [vmem:[%s263 + $0x10] sm:$0xff]
      %v280 = vld [vmem:[%s263 + $0x18] sm:$0xff]
      %v281 = vld [vmem:[%s263 + $0x20] sm:$0xff]
      %v282 = vld [vmem:[%s263 + $0x28] sm:$0xff]
      %v283 = vld [vmem:[%s263 + $0x30] sm:$0xff]
      %v284 = vld [vmem:[%s263 + $0x38] sm:$0xff]
      %v285 = vld [vmem:[%s263 + $0x40] sm:$0xff]
      %v286 = vld [vmem:[%s263 + $0x48] sm:$0xff]
      %v287 = vld [vmem:[%s263 + $0x50] sm:$0xff]
      %v288 = vld [vmem:[%s263 + $0x58] sm:$0xff]
      %v289 = vld [vmem:[%s263 + $0x60] sm:$0xff]
      %v290 = vld [vmem:[%s263 + $0x68] sm:$0xff]
      %v291 = vld [vmem:[%s263 + $0x70] sm:$0xff]
      %v292 = vld [vmem:[%s263 + $0x78] sm:$0xff]
      %v293 = vld [vmem:[%s2] sm:$0xff]
      %v294 = vld [vmem:[%s2 + $0x8] sm:$0xff]
      %v295 = vld [vmem:[%s2 + $0x10] sm:$0xff]
      %v296 = vld [vmem:[%s2 + $0x18] sm:$0xff]
      %v297 = vld [vmem:[%s2 + $0x20] sm:$0xff]
      %v298 = vld [vmem:[%s2 + $0x28] sm:$0xff]
      %v299 = vld [vmem:[%s3] sm:$0x1]
      %v301 = vlaneseq
      %v302 = vshrl.u32 %v301, 7
      %v303 = vsub.s32 0, %v302
      %v304 = vrot.slane %v299, %v303
      %vm306 = vcmask 392192
      %v308 = vsel %vm306, %v277, 0
      %v311 = vsel %vm306, %v278, 0
      %v314 = vsel %vm306, %v279, 0
      %v317 = vsel %vm306, %v280, 0
      %v320 = vsel %vm306, %v281, 0
      %v323 = vsel %vm306, %v282, 0
      %v326 = vsel %vm306, %v283, 0
      %v329 = vsel %vm306, %v284, 0
      %v332 = vsel %vm306, %v285, 0
      %v335 = vsel %vm306, %v286, 0
      %v338 = vsel %vm306, %v287, 0
      %v341 = vsel %vm306, %v288, 0
      %v344 = vsel %vm306, %v289, 0
      %v347 = vsel %vm306, %v290, 0
      %v350 = vsel %vm306, %v291, 0
      %v353 = vsel %vm306, %v292, 0
      %355 = vmatprep.subr.mxu0 0.0
      %356 = vmatpush1.msra.mxu0 %v293
      %357 = vmatprep.subr.mxu0 0.0
      %358 = vmatpush1.msra.mxu0 %v294
      %359 = vmatprep.subr.mxu0 0.0
      %360 = vmatpush1.msra.mxu0 %v295
      %361 = vmatprep.subr.mxu0 0.0
      %362 = vmatpush1.msra.mxu0 %v296
      %363 = vmatprep.subr.mxu0 0.0
      %364 = vmatpush1.msra.mxu0 %v297
      %365 = vmatprep.subr.mxu0 0.0
      %366 = vmatpush1.msra.mxu0 %v298
      %367 = vmatprep.subr.mxu0 0.0
      %368 = vmatpush1.msra.mxu0 0.0
      %369 = vmatprep.subr.mxu0 0.0
      %370 = vmatpush1.msra.mxu0 0.0
      %371 = vmatprep.subr.mxu0 0.0
      %372 = vmatpush1.msra.mxu0 0.0
      %373 = vmatprep.subr.mxu0 0.0
      %374 = vmatpush1.msra.mxu0 0.0
      %375 = vmatprep.subr.mxu0 0.0
      %376 = vmatpush1.msra.mxu0 0.0
      %377 = vmatprep.subr.mxu0 0.0
      %378 = vmatpush1.msra.mxu0 0.0
      %379 = vmatprep.subr.mxu0 0.0
      %380 = vmatpush1.msra.mxu0 0.0
      %381 = vmatprep.subr.mxu0 0.0
      %382 = vmatpush1.msra.mxu0 0.0
      %383 = vmatprep.subr.mxu0 0.0
      %384 = vmatpush1.msra.mxu0 0.0
      %385 = vmatprep.subr.mxu0 0.0
      %386 = vmatpush1.msra.mxu0 0.0
      %387 = vmatprep.subr.mxu0 0.0
      %388 = vmatpush1.msra.mxu0 0.0
      %389 = vmatprep.subr.mxu0 0.0
      %390 = vmatpush1.msra.mxu0 0.0
      %391 = vmatprep.subr.mxu0 0.0
      %392 = vmatpush1.msra.mxu0 0.0
      %393 = vmatprep.subr.mxu0 0.0
      %394 = vmatpush1.msra.mxu0 0.0
      %395 = vmatprep.subr.mxu0 0.0
      %396 = vmatpush1.msra.mxu0 0.0
      %397 = vmatprep.subr.mxu0 0.0
      %398 = vmatpush1.msra.mxu0 0.0
      %399 = vmatprep.subr.mxu0 0.0
      %400 = vmatpush1.msra.mxu0 0.0
      %401 = vmatprep.subr.mxu0 0.0
      %402 = vmatpush1.msra.mxu0 0.0
      %403 = vmatprep.subr.mxu0 0.0
      %404 = vmatpush1.msra.mxu0 0.0
      %405 = vmatprep.subr.mxu0 0.0
      %406 = vmatpush1.msra.mxu0 0.0
      %407 = vmatprep.subr.mxu0 0.0
      %408 = vmatpush1.msra.mxu0 0.0
      %409 = vmatprep.subr.mxu0 0.0
      %410 = vmatpush1.msra.mxu0 0.0
      %411 = vmatprep.subr.mxu0 0.0
      %412 = vmatpush1.msra.mxu0 0.0
      %413 = vmatprep.subr.mxu0 0.0
      %414 = vmatpush1.msra.mxu0 0.0
      %415 = vmatprep.subr.mxu0 0.0
      %416 = vmatpush1.msra.mxu0 0.0
      %417 = vmatprep.subr.mxu0 0.0
      %418 = vmatpush1.msra.mxu0 0.0
      %419 = vmatprep.mubr.f32.mxu0 0.0
      %420 = vmatmul.mubr.f32.gmra.mrb[0].mxu0 %v308
      %v421 = vpop.f32.mrb[0].mxu0
      %v422 = vadd.f32 %v304, %v421
      %v423 = vpop.f32.mrb[0].mxu0
      %424 = vmatprep.mubr.f32.mxu0 0.0
      %425 = vmatmul.mubr.f32.gmra.mrb[0].mxu0 %v311
      %v426 = vpop.f32.mrb[0].mxu0
      %v427 = vadd.f32 %v304, %v426
      %v428 = vpop.f32.mrb[0].mxu0
      %429 = vmatprep.mubr.f32.mxu0 0.0
      %430 = vmatmul.mubr.f32.gmra.mrb[0].mxu0 %v314
      %v431 = vpop.f32.mrb[0].mxu0
      %v432 = vadd.f32 %v304, %v431
      %v433 = vpop.f32.mrb[0].mxu0
      %434 = vmatprep.mubr.f32.mxu0 0.0
      %435 = vmatmul.mubr.f32.gmra.mrb[0].mxu0 %v317
      %v436 = vpop.f32.mrb[0].mxu0
      %v437 = vadd.f32 %v304, %v436
      %v438 = vpop.f32.mrb[0].mxu0
      %439 = vmatprep.mubr.f32.mxu0 0.0
      %440 = vmatmul.mubr.f32.gmra.mrb[0].mxu0 %v320
      %v441 = vpop.f32.mrb[0].mxu0
      %v442 = vadd.f32 %v304, %v441
      %v443 = vpop.f32.mrb[0].mxu0
      %444 = vmatprep.mubr.f32.mxu0 0.0
      %445 = vmatmul.mubr.f32.gmra.mrb[0].mxu0 %v323
      %v446 = vpop.f32.mrb[0].mxu0
      %v447 = vadd.f32 %v304, %v446
      %v448 = vpop.f32.mrb[0].mxu0
      %449 = vmatprep.mubr.f32.mxu0 0.0
      %450 = vmatmul.mubr.f32.gmra.mrb[0].mxu0 %v326
      %v451 = vpop.f32.mrb[0].mxu0
      %v452 = vadd.f32 %v304, %v451
      %v453 = vpop.f32.mrb[0].mxu0
      %454 = vmatprep.mubr.f32.mxu0 0.0
      %455 = vmatmul.mubr.f32.gmra.mrb[0].mxu0 %v329
      %v456 = vpop.f32.mrb[0].mxu0
      %v457 = vadd.f32 %v304, %v456
      %v458 = vpop.f32.mrb[0].mxu0
      %459 = vmatprep.mubr.f32.mxu0 0.0
      %460 = vmatmul.mubr.f32.gmra.mrb[0].mxu0 %v332
      %v461 = vpop.f32.mrb[0].mxu0
      %v462 = vadd.f32 %v304, %v461
      %v463 = vpop.f32.mrb[0].mxu0
      %464 = vmatprep.mubr.f32.mxu0 0.0
      %465 = vmatmul.mubr.f32.gmra.mrb[0].mxu0 %v335
      %v466 = vpop.f32.mrb[0].mxu0
      %v467 = vadd.f32 %v304, %v466
      %v468 = vpop.f32.mrb[0].mxu0
      %469 = vmatprep.mubr.f32.mxu0 0.0
      %470 = vmatmul.mubr.f32.gmra.mrb[0].mxu0 %v338
      %v471 = vpop.f32.mrb[0].mxu0
      %v472 = vadd.f32 %v304, %v471
      %v473 = vpop.f32.mrb[0].mxu0
      %474 = vmatprep.mubr.f32.mxu0 0.0
      %475 = vmatmul.mubr.f32.gmra.mrb[0].mxu0 %v341
      %v476 = vpop.f32.mrb[0].mxu0
      %v477 = vadd.f32 %v304, %v476
      %v478 = vpop.f32.mrb[0].mxu0
      %479 = vmatprep.mubr.f32.mxu0 0.0
      %480 = vmatmul.mubr.f32.gmra.mrb[0].mxu0 %v344
      %v481 = vpop.f32.mrb[0].mxu0
      %v482 = vadd.f32 %v304, %v481
      %v483 = vpop.f32.mrb[0].mxu0
      %484 = vmatprep.mubr.f32.mxu0 0.0
      %485 = vmatmul.mubr.f32.gmra.mrb[0].mxu0 %v347
      %v486 = vpop.f32.mrb[0].mxu0
      %v487 = vadd.f32 %v304, %v486
      %v488 = vpop.f32.mrb[0].mxu0
      %489 = vmatprep.mubr.f32.mxu0 0.0
      %490 = vmatmul.mubr.f32.gmra.mrb[0].mxu0 %v350
      %v491 = vpop.f32.mrb[0].mxu0
      %v492 = vadd.f32 %v304, %v491
      %v493 = vpop.f32.mrb[0].mxu0
      %494 = vmatprep.mubr.f32.mxu0 0.0
      %495 = vmatmul.mubr.f32.gmra.mrb[0].mxu0 %v353
      %v496 = vpop.f32.mrb[0].mxu0
      %v497 = vadd.f32 %v304, %v496
      %v498 = vpop.f32.mrb[0].mxu0
      %499 = vdwg.mxu0
      %v500 = vmax.f32 %v422, 0.0
      %v501 = vmax.f32 %v427, 0.0
      %v502 = vmax.f32 %v432, 0.0
      %v503 = vmax.f32 %v437, 0.0
      %v504 = vmax.f32 %v442, 0.0
      %v505 = vmax.f32 %v447, 0.0
      %v506 = vmax.f32 %v452, 0.0
      %v507 = vmax.f32 %v457, 0.0
      %v508 = vmax.f32 %v462, 0.0
      %v509 = vmax.f32 %v467, 0.0
      %v510 = vmax.f32 %v472, 0.0
      %v511 = vmax.f32 %v477, 0.0
      %v512 = vmax.f32 %v482, 0.0
      %v513 = vmax.f32 %v487, 0.0
      %v514 = vmax.f32 %v492, 0.0
      %v515 = vmax.f32 %v497, 0.0
      %v516 = vld [vmem:[%s4] sm:$0xff]
      %v517 = vld [vmem:[%s4 + $0x8] sm:$0xff]
      %vm518 = vcmask 130048
      %v520 = vsel %vm518, %v500, 0
      %v523 = vsel %vm518, %v501, 0
      %v526 = vsel %vm518, %v502, 0
      %v529 = vsel %vm518, %v503, 0
      %v532 = vsel %vm518, %v504, 0
      %v535 = vsel %vm518, %v505, 0
      %v538 = vsel %vm518, %v506, 0
      %v541 = vsel %vm518, %v507, 0
      %v544 = vsel %vm518, %v508, 0
      %v547 = vsel %vm518, %v509, 0
      %v550 = vsel %vm518, %v510, 0
      %v553 = vsel %vm518, %v511, 0
      %v556 = vsel %vm518, %v512, 0
      %v559 = vsel %vm518, %v513, 0
      %v562 = vsel %vm518, %v514, 0
      %v565 = vsel %vm518, %v515, 0
      %567 = vmatprep.subr.mxu0 0.0
      %568 = vmatpush1.msra.mxu0 %v516
      %569 = vmatprep.subr.mxu0 0.0
      %570 = vmatpush1.msra.mxu0 %v517
      %571 = vmatprep.subr.mxu0 0.0
      %572 = vmatpush1.msra.mxu0 0.0
      %573 = vmatprep.subr.mxu0 0.0
      %574 = vmatpush1.msra.mxu0 0.0
      %575 = vmatprep.subr.mxu0 0.0
      %576 = vmatpush1.msra.mxu0 0.0
      %577 = vmatprep.subr.mxu0 0.0
      %578 = vmatpush1.msra.mxu0 0.0
      %579 = vmatprep.subr.mxu0 0.0
      %580 = vmatpush1.msra.mxu0 0.0
      %581 = vmatprep.subr.mxu0 0.0
      %582 = vmatpush1.msra.mxu0 0.0
      %583 = vmatprep.subr.mxu0 0.0
      %584 = vmatpush1.msra.mxu0 0.0
      %585 = vmatprep.subr.mxu0 0.0
      %586 = vmatpush1.msra.mxu0 0.0
      %587 = vmatprep.subr.mxu0 0.0
      %588 = vmatpush1.msra.mxu0 0.0
      %589 = vmatprep.subr.mxu0 0.0
      %590 = vmatpush1.msra.mxu0 0.0
      %591 = vmatprep.subr.mxu0 0.0
      %592 = vmatpush1.msra.mxu0 0.0
      %593 = vmatprep.subr.mxu0 0.0
      %594 = vmatpush1.msra.mxu0 0.0
      %595 = vmatprep.subr.mxu0 0.0
      %596 = vmatpush1.msra.mxu0 0.0
      %597 = vmatprep.subr.mxu0 0.0
      %598 = vmatpush1.msra.mxu0 0.0
      %599 = vmatprep.subr.mxu0 0.0
      %600 = vmatpush1.msra.mxu0 0.0
      %601 = vmatprep.subr.mxu0 0.0
      %602 = vmatpush1.msra.mxu0 0.0
      %603 = vmatprep.subr.mxu0 0.0
      %604 = vmatpush1.msra.mxu0 0.0
      %605 = vmatprep.subr.mxu0 0.0
      %606 = vmatpush1.msra.mxu0 0.0
      %607 = vmatprep.subr.mxu0 0.0
      %608 = vmatpush1.msra.mxu0 0.0
      %609 = vmatprep.subr.mxu0 0.0
      %610 = vmatpush1.msra.mxu0 0.0
      %611 = vmatprep.subr.mxu0 0.0
      %612 = vmatpush1.msra.mxu0 0.0
      %613 = vmatprep.subr.mxu0 0.0
      %614 = vmatpush1.msra.mxu0 0.0
      %615 = vmatprep.subr.mxu0 0.0
      %616 = vmatpush1.msra.mxu0 0.0
      %617 = vmatprep.subr.mxu0 0.0
      %618 = vmatpush1.msra.mxu0 0.0
      %619 = vmatprep.subr.mxu0 0.0
      %620 = vmatpush1.msra.mxu0 0.0
      %621 = vmatprep.subr.mxu0 0.0
      %622 = vmatpush1.msra.mxu0 0.0
      %623 = vmatprep.subr.mxu0 0.0
      %624 = vmatpush1.msra.mxu0 0.0
      %625 = vmatprep.subr.mxu0 0.0
      %626 = vmatpush1.msra.mxu0 0.0
      %627 = vmatprep.subr.mxu0 0.0
      %628 = vmatpush1.msra.mxu0 0.0
      %629 = vmatprep.subr.mxu0 0.0
      %630 = vmatpush1.msra.mxu0 0.0
      %631 = vmatprep.mubr.f32.mxu0 0.0
      %632 = vmatmul.mubr.f32.gmra.mrb[0].mxu0 %v520
      %v633 = vpop.f32.mrb[0].mxu0
      %v634 = vadd.f32 0.0, %v633
      %v635 = vpop.f32.mrb[0].mxu0
      %636 = vmatprep.mubr.f32.mxu0 0.0
      %637 = vmatmul.mubr.f32.gmra.mrb[0].mxu0 %v523
      %v638 = vpop.f32.mrb[0].mxu0
      %v639 = vadd.f32 0.0, %v638
      %v640 = vpop.f32.mrb[0].mxu0
      %641 = vmatprep.mubr.f32.mxu0 0.0
      %642 = vmatmul.mubr.f32.gmra.mrb[0].mxu0 %v526
      %v643 = vpop.f32.mrb[0].mxu0
      %v644 = vadd.f32 0.0, %v643
      %v645 = vpop.f32.mrb[0].mxu0
      %646 = vmatprep.mubr.f32.mxu0 0.0
      %647 = vmatmul.mubr.f32.gmra.mrb[0].mxu0 %v529
      %v648 = vpop.f32.mrb[0].mxu0
      %v649 = vadd.f32 0.0, %v648
      %v650 = vpop.f32.mrb[0].mxu0
      %651 = vmatprep.mubr.f32.mxu0 0.0
      %652 = vmatmul.mubr.f32.gmra.mrb[0].mxu0 %v532
      %v653 = vpop.f32.mrb[0].mxu0
      %v654 = vadd.f32 0.0, %v653
      %v655 = vpop.f32.mrb[0].mxu0
      %656 = vmatprep.mubr.f32.mxu0 0.0
      %657 = vmatmul.mubr.f32.gmra.mrb[0].mxu0 %v535
      %v658 = vpop.f32.mrb[0].mxu0
      %v659 = vadd.f32 0.0, %v658
      %v660 = vpop.f32.mrb[0].mxu0
      %661 = vmatprep.mubr.f32.mxu0 0.0
      %662 = vmatmul.mubr.f32.gmra.mrb[0].mxu0 %v538
      %v663 = vpop.f32.mrb[0].mxu0
      %v664 = vadd.f32 0.0, %v663
      %v665 = vpop.f32.mrb[0].mxu0
      %666 = vmatprep.mubr.f32.mxu0 0.0
      %667 = vmatmul.mubr.f32.gmra.mrb[0].mxu0 %v541
      %v668 = vpop.f32.mrb[0].mxu0
      %v669 = vadd.f32 0.0, %v668
      %v670 = vpop.f32.mrb[0].mxu0
      %671 = vmatprep.mubr.f32.mxu0 0.0
      %672 = vmatmul.mubr.f32.gmra.mrb[0].mxu0 %v544
      %v673 = vpop.f32.mrb[0].mxu0
      %v674 = vadd.f32 0.0, %v673
      %v675 = vpop.f32.mrb[0].mxu0
      %676 = vmatprep.mubr.f32.mxu0 0.0
      %677 = vmatmul.mubr.f32.gmra.mrb[0].mxu0 %v547
      %v678 = vpop.f32.mrb[0].mxu0
      %v679 = vadd.f32 0.0, %v678
      %v680 = vpop.f32.mrb[0].mxu0
      %681 = vmatprep.mubr.f32.mxu0 0.0
      %682 = vmatmul.mubr.f32.gmra.mrb[0].mxu0 %v550
      %v683 = vpop.f32.mrb[0].mxu0
      %v684 = vadd.f32 0.0, %v683
      %v685 = vpop.f32.mrb[0].mxu0
      %686 = vmatprep.mubr.f32.mxu0 0.0
      %687 = vmatmul.mubr.f32.gmra.mrb[0].mxu0 %v553
      %v688 = vpop.f32.mrb[0].mxu0
      %v689 = vadd.f32 0.0, %v688
      %v690 = vpop.f32.mrb[0].mxu0
      %691 = vmatprep.mubr.f32.mxu0 0.0
      %692 = vmatmul.mubr.f32.gmra.mrb[0].mxu0 %v556
      %v693 = vpop.f32.mrb[0].mxu0
      %v694 = vadd.f32 0.0, %v693
      %v695 = vpop.f32.mrb[0].mxu0
      %696 = vmatprep.mubr.f32.mxu0 0.0
      %697 = vmatmul.mubr.f32.gmra.mrb[0].mxu0 %v559
      %v698 = vpop.f32.mrb[0].mxu0
      %v699 = vadd.f32 0.0, %v698
      %v700 = vpop.f32.mrb[0].mxu0
      %701 = vmatprep.mubr.f32.mxu0 0.0
      %702 = vmatmul.mubr.f32.gmra.mrb[0].mxu0 %v562
      %v703 = vpop.f32.mrb[0].mxu0
      %v704 = vadd.f32 0.0, %v703
      %v705 = vpop.f32.mrb[0].mxu0
      %706 = vmatprep.mubr.f32.mxu0 0.0
      %707 = vmatmul.mubr.f32.gmra.mrb[0].mxu0 %v565
      %v708 = vpop.f32.mrb[0].mxu0
      %v709 = vadd.f32 0.0, %v708
      %v710 = vpop.f32.mrb[0].mxu0
      %711 = vdwg.mxu0
      %713 = vset.pattern.permute.xlu0 32
      %714 = vperm.xlu0 %713, %v634
      %v715 = vpop.permute.xlu0 %714
      %718 = vset.pattern.permute.xlu0 32
      %719 = vperm.xlu0 %718, %v639
      %v720 = vpop.permute.xlu0 %719
      %723 = vset.pattern.permute.xlu0 32
      %724 = vperm.xlu0 %723, %v644
      %v725 = vpop.permute.xlu0 %724
      %728 = vset.pattern.permute.xlu0 32
      %729 = vperm.xlu0 %728, %v649
      %v730 = vpop.permute.xlu0 %729
      %733 = vset.pattern.permute.xlu0 32
      %734 = vperm.xlu0 %733, %v654
      %v735 = vpop.permute.xlu0 %734
      %738 = vset.pattern.permute.xlu0 32
      %739 = vperm.xlu0 %738, %v659
      %v740 = vpop.permute.xlu0 %739
      %743 = vset.pattern.permute.xlu0 32
      %744 = vperm.xlu0 %743, %v664
      %v745 = vpop.permute.xlu0 %744
      %748 = vset.pattern.permute.xlu0 32
      %749 = vperm.xlu0 %748, %v669
      %v750 = vpop.permute.xlu0 %749
      %753 = vset.pattern.permute.xlu0 32
      %754 = vperm.xlu0 %753, %v674
      %v755 = vpop.permute.xlu0 %754
      %758 = vset.pattern.permute.xlu0 32
      %759 = vperm.xlu0 %758, %v679
      %v760 = vpop.permute.xlu0 %759
      %763 = vset.pattern.permute.xlu0 32
      %764 = vperm.xlu0 %763, %v684
      %v765 = vpop.permute.xlu0 %764
      %768 = vset.pattern.permute.xlu0 32
      %769 = vperm.xlu0 %768, %v689
      %v770 = vpop.permute.xlu0 %769
      %773 = vset.pattern.permute.xlu0 32
      %774 = vperm.xlu0 %773, %v694
      %v775 = vpop.permute.xlu0 %774
      %778 = vset.pattern.permute.xlu0 32
      %779 = vperm.xlu0 %778, %v699
      %v780 = vpop.permute.xlu0 %779
      %783 = vset.pattern.permute.xlu0 32
      %784 = vperm.xlu0 %783, %v704
      %v785 = vpop.permute.xlu0 %784
      %788 = vset.pattern.permute.xlu0 32
      %789 = vperm.xlu0 %788, %v709
      %v790 = vpop.permute.xlu0 %789
      %792 = vxpose.xlu0.b32.start [1/16] %v715, 128
      %793 = vxpose.xlu0.b32.cont [2/16] %v720, 128
      %794 = vxpose.xlu0.b32.cont [3/16] %v725, 128
      %795 = vxpose.xlu0.b32.cont [4/16] %v730, 128
      %796 = vxpose.xlu0.b32.cont [5/16] %v735, 128
      %797 = vxpose.xlu0.b32.cont [6/16] %v740, 128
      %798 = vxpose.xlu0.b32.cont [7/16] %v745, 128
      %799 = vxpose.xlu0.b32.cont [8/16] %v750, 128
      %800 = vxpose.xlu0.b32.cont [9/16] %v755, 128
      %801 = vxpose.xlu0.b32.cont [10/16] %v760, 128
      %802 = vxpose.xlu0.b32.cont [11/16] %v765, 128
      %803 = vxpose.xlu0.b32.cont [12/16] %v770, 128
      %804 = vxpose.xlu0.b32.cont [13/16] %v775, 128
      %805 = vxpose.xlu0.b32.cont [14/16] %v780, 128
      %806 = vxpose.xlu0.b32.cont [15/16] %v785, 128
      %807 = vxpose.xlu0.b32.end [16/16] %v790, 128
      %v808 = vpop.trf.xlu0
      %v809 = vpop.trf.xlu0
      %v810 = vpop.trf.xlu0
      %v811 = vpop.trf.xlu0
      %v812 = vpop.trf.xlu0
      %v813 = vpop.trf.xlu0
      %v814 = vpop.trf.xlu0
      %v815 = vpop.trf.xlu0
      %v816 = vpop.trf.xlu0
      %v817 = vpop.trf.xlu0
      %v818 = vpop.trf.xlu0
      %v819 = vpop.trf.xlu0
      %v820 = vpop.trf.xlu0
      %v821 = vpop.trf.xlu0
      %v822 = vpop.trf.xlu0
      %v823 = vpop.trf.xlu0
      %824 = vset.pattern.permute.xlu0 33
      %825 = vperm.xlu0 %824, %v634
      %v826 = vpop.permute.xlu0 %825
      %828 = vset.pattern.permute.xlu0 33
      %829 = vperm.xlu0 %828, %v639
      %v830 = vpop.permute.xlu0 %829
      %832 = vset.pattern.permute.xlu0 33
      %833 = vperm.xlu0 %832, %v644
      %v834 = vpop.permute.xlu0 %833
      %836 = vset.pattern.permute.xlu0 33
      %837 = vperm.xlu0 %836, %v649
      %v838 = vpop.permute.xlu0 %837
      %840 = vset.pattern.permute.xlu0 33
      %841 = vperm.xlu0 %840, %v654
      %v842 = vpop.permute.xlu0 %841
      %844 = vset.pattern.permute.xlu0 33
      %845 = vperm.xlu0 %844, %v659
      %v846 = vpop.permute.xlu0 %845
      %848 = vset.pattern.permute.xlu0 33
      %849 = vperm.xlu0 %848, %v664
      %v850 = vpop.permute.xlu0 %849
      %852 = vset.pattern.permute.xlu0 33
      %853 = vperm.xlu0 %852, %v669
      %v854 = vpop.permute.xlu0 %853
      %856 = vset.pattern.permute.xlu0 33
      %857 = vperm.xlu0 %856, %v674
      %v858 = vpop.permute.xlu0 %857
      %860 = vset.pattern.permute.xlu0 33
      %861 = vperm.xlu0 %860, %v679
      %v862 = vpop.permute.xlu0 %861
      %864 = vset.pattern.permute.xlu0 33
      %865 = vperm.xlu0 %864, %v684
      %v866 = vpop.permute.xlu0 %865
      %868 = vset.pattern.permute.xlu0 33
      %869 = vperm.xlu0 %868, %v689
      %v870 = vpop.permute.xlu0 %869
      %872 = vset.pattern.permute.xlu0 33
      %873 = vperm.xlu0 %872, %v694
      %v874 = vpop.permute.xlu0 %873
      %876 = vset.pattern.permute.xlu0 33
      %877 = vperm.xlu0 %876, %v699
      %v878 = vpop.permute.xlu0 %877
      %880 = vset.pattern.permute.xlu0 33
      %881 = vperm.xlu0 %880, %v704
      %v882 = vpop.permute.xlu0 %881
      %884 = vset.pattern.permute.xlu0 33
      %885 = vperm.xlu0 %884, %v709
      %v886 = vpop.permute.xlu0 %885
      %v888 = vadd.f32 %v826, %v808
      %v889 = vadd.f32 %v830, %v809
      %v890 = vadd.f32 %v834, %v810
      %v891 = vadd.f32 %v838, %v811
      %v892 = vadd.f32 %v842, %v812
      %v893 = vadd.f32 %v846, %v813
      %v894 = vadd.f32 %v850, %v814
      %v895 = vadd.f32 %v854, %v815
      %v896 = vadd.f32 %v858, %v816
      %v897 = vadd.f32 %v862, %v817
      %v898 = vadd.f32 %v866, %v818
      %v899 = vadd.f32 %v870, %v819
      %v900 = vadd.f32 %v874, %v820
      %v901 = vadd.f32 %v878, %v821
      %v902 = vadd.f32 %v882, %v822
      %v903 = vadd.f32 %v886, %v823
      %vm904 = vcmp.gt.f32.partialorder %v888, 0.0
      %vm905 = vcmp.gt.f32.partialorder %v889, 0.0
      %vm906 = vcmp.gt.f32.partialorder %v890, 0.0
      %vm907 = vcmp.gt.f32.partialorder %v891, 0.0
      %vm908 = vcmp.gt.f32.partialorder %v892, 0.0
      %vm909 = vcmp.gt.f32.partialorder %v893, 0.0
      %vm910 = vcmp.gt.f32.partialorder %v894, 0.0
      %vm911 = vcmp.gt.f32.partialorder %v895, 0.0
      %vm912 = vcmp.gt.f32.partialorder %v896, 0.0
      %vm913 = vcmp.gt.f32.partialorder %v897, 0.0
      %vm914 = vcmp.gt.f32.partialorder %v898, 0.0
      %vm915 = vcmp.gt.f32.partialorder %v899, 0.0
      %vm916 = vcmp.gt.f32.partialorder %v900, 0.0
      %vm917 = vcmp.gt.f32.partialorder %v901, 0.0
      %vm918 = vcmp.gt.f32.partialorder %v902, 0.0
      %vm919 = vcmp.gt.f32.partialorder %v903, 0.0
      %v920 = vmul.f32 %v888, 0.2
      %v921 = vmul.f32 %v889, 0.2
      %v922 = vmul.f32 %v890, 0.2
      %v923 = vmul.f32 %v891, 0.2
      %v924 = vmul.f32 %v892, 0.2
      %v925 = vmul.f32 %v893, 0.2
      %v926 = vmul.f32 %v894, 0.2
      %v927 = vmul.f32 %v895, 0.2
      %v928 = vmul.f32 %v896, 0.2
      %v929 = vmul.f32 %v897, 0.2
      %v930 = vmul.f32 %v898, 0.2
      %v931 = vmul.f32 %v899, 0.2
      %v932 = vmul.f32 %v900, 0.2
      %v933 = vmul.f32 %v901, 0.2
      %v934 = vmul.f32 %v902, 0.2
      %v935 = vmul.f32 %v903, 0.2
      %v936 = vsel %vm904, %v888, %v920
      %v937 = vsel %vm905, %v889, %v921
      %v938 = vsel %vm906, %v890, %v922
      %v939 = vsel %vm907, %v891, %v923
      %v940 = vsel %vm908, %v892, %v924
      %v941 = vsel %vm909, %v893, %v925
      %v942 = vsel %vm910, %v894, %v926
      %v943 = vsel %vm911, %v895, %v927
      %v944 = vsel %vm912, %v896, %v928
      %v945 = vsel %vm913, %v897, %v929
      %v946 = vsel %vm914, %v898, %v930
      %v947 = vsel %vm915, %v899, %v931
      %v948 = vsel %vm916, %v900, %v932
      %v949 = vsel %vm917, %v901, %v933
      %v950 = vsel %vm918, %v902, %v934
      %v951 = vsel %vm919, %v903, %v935
      %v952 = vld [vmem:[%s269] sm:$0xff]
      %v953 = vld [vmem:[%s269 + $0x8] sm:$0xff]
      %v954 = vld [vmem:[%s269 + $0x10] sm:$0xff]
      %v955 = vld [vmem:[%s269 + $0x18] sm:$0xff]
      %v956 = vld [vmem:[%s269 + $0x20] sm:$0xff]
      %v957 = vld [vmem:[%s269 + $0x28] sm:$0xff]
      %v958 = vld [vmem:[%s269 + $0x30] sm:$0xff]
      %v959 = vld [vmem:[%s269 + $0x38] sm:$0xff]
      %v960 = vld [vmem:[%s269 + $0x40] sm:$0xff]
      %v961 = vld [vmem:[%s269 + $0x48] sm:$0xff]
      %v962 = vld [vmem:[%s269 + $0x50] sm:$0xff]
      %v963 = vld [vmem:[%s269 + $0x58] sm:$0xff]
      %v964 = vld [vmem:[%s269 + $0x60] sm:$0xff]
      %v965 = vld [vmem:[%s269 + $0x68] sm:$0xff]
      %v966 = vld [vmem:[%s269 + $0x70] sm:$0xff]
      %v967 = vld [vmem:[%s269 + $0x78] sm:$0xff]
      %vm968 = vcmp.gt.f32.partialorder %v952, 0.0
      %vm969 = vcmp.gt.f32.partialorder %v953, 0.0
      %vm970 = vcmp.gt.f32.partialorder %v954, 0.0
      %vm971 = vcmp.gt.f32.partialorder %v955, 0.0
      %vm972 = vcmp.gt.f32.partialorder %v956, 0.0
      %vm973 = vcmp.gt.f32.partialorder %v957, 0.0
      %vm974 = vcmp.gt.f32.partialorder %v958, 0.0
      %vm975 = vcmp.gt.f32.partialorder %v959, 0.0
      %vm976 = vcmp.gt.f32.partialorder %v960, 0.0
      %vm977 = vcmp.gt.f32.partialorder %v961, 0.0
      %vm978 = vcmp.gt.f32.partialorder %v962, 0.0
      %vm979 = vcmp.gt.f32.partialorder %v963, 0.0
      %vm980 = vcmp.gt.f32.partialorder %v964, 0.0
      %vm981 = vcmp.gt.f32.partialorder %v965, 0.0
      %vm982 = vcmp.gt.f32.partialorder %v966, 0.0
      %vm983 = vcmp.gt.f32.partialorder %v967, 0.0
      %v984 = vsel %vm968, %v936, -1e+30
      %v985 = vsel %vm969, %v937, -1e+30
      %v986 = vsel %vm970, %v938, -1e+30
      %v987 = vsel %vm971, %v939, -1e+30
      %v988 = vsel %vm972, %v940, -1e+30
      %v989 = vsel %vm973, %v941, -1e+30
      %v990 = vsel %vm974, %v942, -1e+30
      %v991 = vsel %vm975, %v943, -1e+30
      %v992 = vsel %vm976, %v944, -1e+30
      %v993 = vsel %vm977, %v945, -1e+30
      %v994 = vsel %vm978, %v946, -1e+30
      %v995 = vsel %vm979, %v947, -1e+30
      %v996 = vsel %vm980, %v948, -1e+30
      %v997 = vsel %vm981, %v949, -1e+30
      %v998 = vsel %vm982, %v950, -1e+30
      %v999 = vsel %vm983, %v951, -1e+30
      %1000 = vmax.xlane.f32.xlu0 %v984
      %v1001 = vpop.xlane.xlu0 %1000
      %1002 = vmax.xlane.f32.xlu0 %v985
      %v1003 = vpop.xlane.xlu0 %1002
      %1004 = vmax.xlane.f32.xlu0 %v986
      %v1005 = vpop.xlane.xlu0 %1004
      %1006 = vmax.xlane.f32.xlu0 %v987
      %v1007 = vpop.xlane.xlu0 %1006
      %1008 = vmax.xlane.f32.xlu0 %v988
      %v1009 = vpop.xlane.xlu0 %1008
      %1010 = vmax.xlane.f32.xlu0 %v989
      %v1011 = vpop.xlane.xlu0 %1010
      %1012 = vmax.xlane.f32.xlu0 %v990
      %v1013 = vpop.xlane.xlu0 %1012
      %1014 = vmax.xlane.f32.xlu0 %v991
      %v1015 = vpop.xlane.xlu0 %1014
      %1016 = vmax.xlane.f32.xlu0 %v992
      %v1017 = vpop.xlane.xlu0 %1016
      %1018 = vmax.xlane.f32.xlu0 %v993
      %v1019 = vpop.xlane.xlu0 %1018
      %1020 = vmax.xlane.f32.xlu0 %v994
      %v1021 = vpop.xlane.xlu0 %1020
      %1022 = vmax.xlane.f32.xlu0 %v995
      %v1023 = vpop.xlane.xlu0 %1022
      %1024 = vmax.xlane.f32.xlu0 %v996
      %v1025 = vpop.xlane.xlu0 %1024
      %1026 = vmax.xlane.f32.xlu0 %v997
      %v1027 = vpop.xlane.xlu0 %1026
      %1028 = vmax.xlane.f32.xlu0 %v998
      %v1029 = vpop.xlane.xlu0 %1028
      %1030 = vmax.xlane.f32.xlu0 %v999
      %v1031 = vpop.xlane.xlu0 %1030
      %v1032 = vsub.f32 %v984, %v1001
      %v1033 = vsub.f32 %v985, %v1003
      %v1034 = vsub.f32 %v986, %v1005
      %v1035 = vsub.f32 %v987, %v1007
      %v1036 = vsub.f32 %v988, %v1009
      %v1037 = vsub.f32 %v989, %v1011
      %v1038 = vsub.f32 %v990, %v1013
      %v1039 = vsub.f32 %v991, %v1015
      %v1040 = vsub.f32 %v992, %v1017
      %v1041 = vsub.f32 %v993, %v1019
      %v1042 = vsub.f32 %v994, %v1021
      %v1043 = vsub.f32 %v995, %v1023
      %v1044 = vsub.f32 %v996, %v1025
      %v1045 = vsub.f32 %v997, %v1027
      %v1046 = vsub.f32 %v998, %v1029
      %v1047 = vsub.f32 %v999, %v1031
      %v1048 = vmul.f32 %v1032, 1.442695
      %v1049 = vpow.pop %v1048
      %v1050 = vmul.f32 %v1033, 1.442695
      %v1051 = vpow.pop %v1050
      %v1052 = vmul.f32 %v1034, 1.442695
      %v1053 = vpow.pop %v1052
      %v1054 = vmul.f32 %v1035, 1.442695
      %v1055 = vpow.pop %v1054
      %v1056 = vmul.f32 %v1036, 1.442695
      %v1057 = vpow.pop %v1056
      %v1058 = vmul.f32 %v1037, 1.442695
      %v1059 = vpow.pop %v1058
      %v1060 = vmul.f32 %v1038, 1.442695
      %v1061 = vpow.pop %v1060
      %v1062 = vmul.f32 %v1039, 1.442695
      %v1063 = vpow.pop %v1062
      %v1064 = vmul.f32 %v1040, 1.442695
      %v1065 = vpow.pop %v1064
      %v1066 = vmul.f32 %v1041, 1.442695
      %v1067 = vpow.pop %v1066
      %v1068 = vmul.f32 %v1042, 1.442695
      %v1069 = vpow.pop %v1068
      %v1070 = vmul.f32 %v1043, 1.442695
      %v1071 = vpow.pop %v1070
      %v1072 = vmul.f32 %v1044, 1.442695
      %v1073 = vpow.pop %v1072
      %v1074 = vmul.f32 %v1045, 1.442695
      %v1075 = vpow.pop %v1074
      %v1076 = vmul.f32 %v1046, 1.442695
      %v1077 = vpow.pop %v1076
      %v1078 = vmul.f32 %v1047, 1.442695
      %v1079 = vpow.pop %v1078
      %v1080 = vsel %vm968, %v1049, 0.0
      %v1081 = vsel %vm969, %v1051, 0.0
      %v1082 = vsel %vm970, %v1053, 0.0
      %v1083 = vsel %vm971, %v1055, 0.0
      %v1084 = vsel %vm972, %v1057, 0.0
      %v1085 = vsel %vm973, %v1059, 0.0
      %v1086 = vsel %vm974, %v1061, 0.0
      %v1087 = vsel %vm975, %v1063, 0.0
      %v1088 = vsel %vm976, %v1065, 0.0
      %v1089 = vsel %vm977, %v1067, 0.0
      %v1090 = vsel %vm978, %v1069, 0.0
      %v1091 = vsel %vm979, %v1071, 0.0
      %v1092 = vsel %vm980, %v1073, 0.0
      %v1093 = vsel %vm981, %v1075, 0.0
      %v1094 = vsel %vm982, %v1077, 0.0
      %v1095 = vsel %vm983, %v1079, 0.0
      %1096 = vadd.xlane.f32.xlu0 %v1080
      %v1097 = vpop.xlane.xlu0 %1096
      %1098 = vadd.xlane.f32.xlu0 %v1081
      %v1099 = vpop.xlane.xlu0 %1098
      %1100 = vadd.xlane.f32.xlu0 %v1082
      %v1101 = vpop.xlane.xlu0 %1100
      %1102 = vadd.xlane.f32.xlu0 %v1083
      %v1103 = vpop.xlane.xlu0 %1102
      %1104 = vadd.xlane.f32.xlu0 %v1084
      %v1105 = vpop.xlane.xlu0 %1104
      %1106 = vadd.xlane.f32.xlu0 %v1085
      %v1107 = vpop.xlane.xlu0 %1106
      %1108 = vadd.xlane.f32.xlu0 %v1086
      %v1109 = vpop.xlane.xlu0 %1108
      %1110 = vadd.xlane.f32.xlu0 %v1087
      %v1111 = vpop.xlane.xlu0 %1110
      %1112 = vadd.xlane.f32.xlu0 %v1088
      %v1113 = vpop.xlane.xlu0 %1112
      %1114 = vadd.xlane.f32.xlu0 %v1089
      %v1115 = vpop.xlane.xlu0 %1114
      %1116 = vadd.xlane.f32.xlu0 %v1090
      %v1117 = vpop.xlane.xlu0 %1116
      %1118 = vadd.xlane.f32.xlu0 %v1091
      %v1119 = vpop.xlane.xlu0 %1118
      %1120 = vadd.xlane.f32.xlu0 %v1092
      %v1121 = vpop.xlane.xlu0 %1120
      %1122 = vadd.xlane.f32.xlu0 %v1093
      %v1123 = vpop.xlane.xlu0 %1122
      %1124 = vadd.xlane.f32.xlu0 %v1094
      %v1125 = vpop.xlane.xlu0 %1124
      %1126 = vadd.xlane.f32.xlu0 %v1095
      %v1127 = vpop.xlane.xlu0 %1126
      %v1128 = vmax.f32 %v1097, 1e-30
      %v1129 = vmax.f32 %v1099, 1e-30
      %v1130 = vmax.f32 %v1101, 1e-30
      %v1131 = vmax.f32 %v1103, 1e-30
      %v1132 = vmax.f32 %v1105, 1e-30
      %v1133 = vmax.f32 %v1107, 1e-30
      %v1134 = vmax.f32 %v1109, 1e-30
      %v1135 = vmax.f32 %v1111, 1e-30
      %v1136 = vmax.f32 %v1113, 1e-30
      %v1137 = vmax.f32 %v1115, 1e-30
      %v1138 = vmax.f32 %v1117, 1e-30
      %v1139 = vmax.f32 %v1119, 1e-30
      %v1140 = vmax.f32 %v1121, 1e-30
      %v1141 = vmax.f32 %v1123, 1e-30
      %v1142 = vmax.f32 %v1125, 1e-30
      %v1143 = vmax.f32 %v1127, 1e-30
      %v1144 = vrcp.pop %v1128
      %v1145 = vmul.f32 %v1080, %v1144
      %v1146 = vrcp.pop %v1129
      %v1147 = vmul.f32 %v1081, %v1146
      %v1148 = vrcp.pop %v1130
      %v1149 = vmul.f32 %v1082, %v1148
      %v1150 = vrcp.pop %v1131
      %v1151 = vmul.f32 %v1083, %v1150
      %v1152 = vrcp.pop %v1132
      %v1153 = vmul.f32 %v1084, %v1152
      %v1154 = vrcp.pop %v1133
      %v1155 = vmul.f32 %v1085, %v1154
      %v1156 = vrcp.pop %v1134
      %v1157 = vmul.f32 %v1086, %v1156
      %v1158 = vrcp.pop %v1135
      %v1159 = vmul.f32 %v1087, %v1158
      %v1160 = vrcp.pop %v1136
      %v1161 = vmul.f32 %v1088, %v1160
      %v1162 = vrcp.pop %v1137
      %v1163 = vmul.f32 %v1089, %v1162
      %v1164 = vrcp.pop %v1138
      %v1165 = vmul.f32 %v1090, %v1164
      %v1166 = vrcp.pop %v1139
      %v1167 = vmul.f32 %v1091, %v1166
      %v1168 = vrcp.pop %v1140
      %v1169 = vmul.f32 %v1092, %v1168
      %v1170 = vrcp.pop %v1141
      %v1171 = vmul.f32 %v1093, %v1170
      %v1172 = vrcp.pop %v1142
      %v1173 = vmul.f32 %v1094, %v1172
      %v1174 = vrcp.pop %v1143
      %v1175 = vmul.f32 %v1095, %v1174
      %v1176 = vld [vmem:[%s5] sm:$0x1]
      %v1178 = vlaneseq
      %v1179 = vshrl.u32 %v1178, 7
      %v1180 = vsub.s32 0, %v1179
      %v1181 = vrot.slane %v1176, %v1180
      %1183 = vmatprep.subr.mxu0 0.0
      %1184 = vmatpush1.msra.mxu0 %v634
      %1185 = vmatprep.subr.mxu0 0.0
      %1186 = vmatpush1.msra.mxu0 %v639
      %1187 = vmatprep.subr.mxu0 0.0
      %1188 = vmatpush1.msra.mxu0 %v644
      %1189 = vmatprep.subr.mxu0 0.0
      %1190 = vmatpush1.msra.mxu0 %v649
      %1191 = vmatprep.subr.mxu0 0.0
      %1192 = vmatpush1.msra.mxu0 %v654
      %1193 = vmatprep.subr.mxu0 0.0
      %1194 = vmatpush1.msra.mxu0 %v659
      %1195 = vmatprep.subr.mxu0 0.0
      %1196 = vmatpush1.msra.mxu0 %v664
      %1197 = vmatprep.subr.mxu0 0.0
      %1198 = vmatpush1.msra.mxu0 %v669
      %1199 = vmatprep.subr.mxu0 0.0
      %1200 = vmatpush1.msra.mxu0 %v674
      %1201 = vmatprep.subr.mxu0 0.0
      %1202 = vmatpush1.msra.mxu0 %v679
      %1203 = vmatprep.subr.mxu0 0.0
      %1204 = vmatpush1.msra.mxu0 %v684
      %1205 = vmatprep.subr.mxu0 0.0
      %1206 = vmatpush1.msra.mxu0 %v689
      %1207 = vmatprep.subr.mxu0 0.0
      %1208 = vmatpush1.msra.mxu0 %v694
      %1209 = vmatprep.subr.mxu0 0.0
      %1210 = vmatpush1.msra.mxu0 %v699
      %1211 = vmatprep.subr.mxu0 0.0
      %1212 = vmatpush1.msra.mxu0 %v704
      %1213 = vmatprep.subr.mxu0 0.0
      %1214 = vmatpush1.msra.mxu0 %v709
      %1215 = vmatprep.subr.mxu0 0.0
      %1216 = vmatpush1.msra.mxu0 0.0
      %1217 = vmatprep.subr.mxu0 0.0
      %1218 = vmatpush1.msra.mxu0 0.0
      %1219 = vmatprep.subr.mxu0 0.0
      %1220 = vmatpush1.msra.mxu0 0.0
      %1221 = vmatprep.subr.mxu0 0.0
      %1222 = vmatpush1.msra.mxu0 0.0
      %1223 = vmatprep.subr.mxu0 0.0
      %1224 = vmatpush1.msra.mxu0 0.0
      %1225 = vmatprep.subr.mxu0 0.0
      %1226 = vmatpush1.msra.mxu0 0.0
      %1227 = vmatprep.subr.mxu0 0.0
      %1228 = vmatpush1.msra.mxu0 0.0
      %1229 = vmatprep.subr.mxu0 0.0
      %1230 = vmatpush1.msra.mxu0 0.0
      %1231 = vmatprep.subr.mxu0 0.0
      %1232 = vmatpush1.msra.mxu0 0.0
      %1233 = vmatprep.subr.mxu0 0.0
      %1234 = vmatpush1.msra.mxu0 0.0
      %1235 = vmatprep.subr.mxu0 0.0
      %1236 = vmatpush1.msra.mxu0 0.0
      %1237 = vmatprep.subr.mxu0 0.0
      %1238 = vmatpush1.msra.mxu0 0.0
      %1239 = vmatprep.subr.mxu0 0.0
      %1240 = vmatpush1.msra.mxu0 0.0
      %1241 = vmatprep.subr.mxu0 0.0
      %1242 = vmatpush1.msra.mxu0 0.0
      %1243 = vmatprep.subr.mxu0 0.0
      %1244 = vmatpush1.msra.mxu0 0.0
      %1245 = vmatprep.subr.mxu0 0.0
      %1246 = vmatpush1.msra.mxu0 0.0
      %1247 = vmatprep.mubr.f32.mxu0 0.0
      %1248 = vmatmul.mubr.f32.gmra.mrb[0].mxu0 %v1145
      %v1249 = vpop.f32.mrb[0].mxu0
      %v1250 = vadd.f32 %v1181, %v1249
      %v1251 = vpop.f32.mrb[0].mxu0
      %1252 = vmatprep.mubr.f32.mxu0 0.0
      %1253 = vmatmul.mubr.f32.gmra.mrb[0].mxu0 %v1147
      %v1254 = vpop.f32.mrb[0].mxu0
      %v1255 = vadd.f32 %v1181, %v1254
      %v1256 = vpop.f32.mrb[0].mxu0
      %1257 = vmatprep.mubr.f32.mxu0 0.0
      %1258 = vmatmul.mubr.f32.gmra.mrb[0].mxu0 %v1149
      %v1259 = vpop.f32.mrb[0].mxu0
      %v1260 = vadd.f32 %v1181, %v1259
      %v1261 = vpop.f32.mrb[0].mxu0
      %1262 = vmatprep.mubr.f32.mxu0 0.0
      %1263 = vmatmul.mubr.f32.gmra.mrb[0].mxu0 %v1151
      %v1264 = vpop.f32.mrb[0].mxu0
      %v1265 = vadd.f32 %v1181, %v1264
      %v1266 = vpop.f32.mrb[0].mxu0
      %1267 = vmatprep.mubr.f32.mxu0 0.0
      %1268 = vmatmul.mubr.f32.gmra.mrb[0].mxu0 %v1153
      %v1269 = vpop.f32.mrb[0].mxu0
      %v1270 = vadd.f32 %v1181, %v1269
      %v1271 = vpop.f32.mrb[0].mxu0
      %1272 = vmatprep.mubr.f32.mxu0 0.0
      %1273 = vmatmul.mubr.f32.gmra.mrb[0].mxu0 %v1155
      %v1274 = vpop.f32.mrb[0].mxu0
      %v1275 = vadd.f32 %v1181, %v1274
      %v1276 = vpop.f32.mrb[0].mxu0
      %1277 = vmatprep.mubr.f32.mxu0 0.0
      %1278 = vmatmul.mubr.f32.gmra.mrb[0].mxu0 %v1157
      %v1279 = vpop.f32.mrb[0].mxu0
      %v1280 = vadd.f32 %v1181, %v1279
      %v1281 = vpop.f32.mrb[0].mxu0
      %1282 = vmatprep.mubr.f32.mxu0 0.0
      %1283 = vmatmul.mubr.f32.gmra.mrb[0].mxu0 %v1159
      %v1284 = vpop.f32.mrb[0].mxu0
      %v1285 = vadd.f32 %v1181, %v1284
      %v1286 = vpop.f32.mrb[0].mxu0
      %1287 = vmatprep.mubr.f32.mxu0 0.0
      %1288 = vmatmul.mubr.f32.gmra.mrb[0].mxu0 %v1161
      %v1289 = vpop.f32.mrb[0].mxu0
      %v1290 = vadd.f32 %v1181, %v1289
      %v1291 = vpop.f32.mrb[0].mxu0
      %1292 = vmatprep.mubr.f32.mxu0 0.0
      %1293 = vmatmul.mubr.f32.gmra.mrb[0].mxu0 %v1163
      %v1294 = vpop.f32.mrb[0].mxu0
      %v1295 = vadd.f32 %v1181, %v1294
      %v1296 = vpop.f32.mrb[0].mxu0
      %1297 = vmatprep.mubr.f32.mxu0 0.0
      %1298 = vmatmul.mubr.f32.gmra.mrb[0].mxu0 %v1165
      %v1299 = vpop.f32.mrb[0].mxu0
      %v1300 = vadd.f32 %v1181, %v1299
      %v1301 = vpop.f32.mrb[0].mxu0
      %1302 = vmatprep.mubr.f32.mxu0 0.0
      %1303 = vmatmul.mubr.f32.gmra.mrb[0].mxu0 %v1167
      %v1304 = vpop.f32.mrb[0].mxu0
      %v1305 = vadd.f32 %v1181, %v1304
      %v1306 = vpop.f32.mrb[0].mxu0
      %1307 = vmatprep.mubr.f32.mxu0 0.0
      %1308 = vmatmul.mubr.f32.gmra.mrb[0].mxu0 %v1169
      %v1309 = vpop.f32.mrb[0].mxu0
      %v1310 = vadd.f32 %v1181, %v1309
      %v1311 = vpop.f32.mrb[0].mxu0
      %1312 = vmatprep.mubr.f32.mxu0 0.0
      %1313 = vmatmul.mubr.f32.gmra.mrb[0].mxu0 %v1171
      %v1314 = vpop.f32.mrb[0].mxu0
      %v1315 = vadd.f32 %v1181, %v1314
      %v1316 = vpop.f32.mrb[0].mxu0
      %1317 = vmatprep.mubr.f32.mxu0 0.0
      %1318 = vmatmul.mubr.f32.gmra.mrb[0].mxu0 %v1173
      %v1319 = vpop.f32.mrb[0].mxu0
      %v1320 = vadd.f32 %v1181, %v1319
      %v1321 = vpop.f32.mrb[0].mxu0
      %1322 = vmatprep.mubr.f32.mxu0 0.0
      %1323 = vmatmul.mubr.f32.gmra.mrb[0].mxu0 %v1175
      %v1324 = vpop.f32.mrb[0].mxu0
      %v1325 = vadd.f32 %v1181, %v1324
      %v1326 = vpop.f32.mrb[0].mxu0
      %1327 = vdwg.mxu0
      %v1328 = vlaneseq
      %v1329 = vand.u32 %v1328, 127
      %vm1330 = vcmp.lt.s32.totalorder %v1329, 16
      %v1331 = vtanh.pop %v1250
      %v1332 = vtanh.pop %v1255
      %v1333 = vtanh.pop %v1260
      %v1334 = vtanh.pop %v1265
      %v1335 = vtanh.pop %v1270
      %v1336 = vtanh.pop %v1275
      %v1337 = vtanh.pop %v1280
      %v1338 = vtanh.pop %v1285
      %v1339 = vtanh.pop %v1290
      %v1340 = vtanh.pop %v1295
      %v1341 = vtanh.pop %v1300
      %v1342 = vtanh.pop %v1305
      %v1343 = vtanh.pop %v1310
      %v1344 = vtanh.pop %v1315
      %v1345 = vtanh.pop %v1320
      %v1346 = vtanh.pop %v1325
      %v1347 = vsel %vm1330, %v1250, %v1331
      %v1348 = vsel %vm1330, %v1255, %v1332
      %v1349 = vsel %vm1330, %v1260, %v1333
      %v1350 = vsel %vm1330, %v1265, %v1334
      %v1351 = vsel %vm1330, %v1270, %v1335
      %v1352 = vsel %vm1330, %v1275, %v1336
      %v1353 = vsel %vm1330, %v1280, %v1337
      %v1354 = vsel %vm1330, %v1285, %v1338
      %v1355 = vsel %vm1330, %v1290, %v1339
      %v1356 = vsel %vm1330, %v1295, %v1340
      %v1357 = vsel %vm1330, %v1300, %v1341
      %v1358 = vsel %vm1330, %v1305, %v1342
      %v1359 = vsel %vm1330, %v1310, %v1343
      %v1360 = vsel %vm1330, %v1315, %v1344
      %v1361 = vsel %vm1330, %v1320, %v1345
      %v1362 = vsel %vm1330, %v1325, %v1346
      %vm1363 = vcmask 261120
      %1364 = vst.msk [vmem:[%s275] sm:$0xff] %vm1363, %v1347
      %1365 = vst.msk [vmem:[%s275 + $0x8] sm:$0xff] %vm1363, %v1348
      %1366 = vst.msk [vmem:[%s275 + $0x10] sm:$0xff] %vm1363, %v1349
      %1367 = vst.msk [vmem:[%s275 + $0x18] sm:$0xff] %vm1363, %v1350
      %1368 = vst.msk [vmem:[%s275 + $0x20] sm:$0xff] %vm1363, %v1351
      %1369 = vst.msk [vmem:[%s275 + $0x28] sm:$0xff] %vm1363, %v1352
      %1370 = vst.msk [vmem:[%s275 + $0x30] sm:$0xff] %vm1363, %v1353
      %1371 = vst.msk [vmem:[%s275 + $0x38] sm:$0xff] %vm1363, %v1354
      %1372 = vst.msk [vmem:[%s275 + $0x40] sm:$0xff] %vm1363, %v1355
      %1373 = vst.msk [vmem:[%s275 + $0x48] sm:$0xff] %vm1363, %v1356
      %1374 = vst.msk [vmem:[%s275 + $0x50] sm:$0xff] %vm1363, %v1357
      %1375 = vst.msk [vmem:[%s275 + $0x58] sm:$0xff] %vm1363, %v1358
      %1376 = vst.msk [vmem:[%s275 + $0x60] sm:$0xff] %vm1363, %v1359
      %1377 = vst.msk [vmem:[%s275 + $0x68] sm:$0xff] %vm1363, %v1360
      %1378 = vst.msk [vmem:[%s275 + $0x70] sm:$0xff] %vm1363, %v1361
      %1379 = vst.msk [vmem:[%s275 + $0x78] sm:$0xff] %vm1363, %v1362
      %s1380 = smul.u32 16, %s17
      %p1381 = scmp.lt.s32.totalorder %s1380, 31
      %s1382 = scalar_select %p1381, %s1380, 31
      %s1383 = smul.addr %s1382, 8
      %s1384 = scalar_lea.vmem %s6, %s1383
      // Predicated region
      $region45: #{tpu_custom_call.1} parent=43 // pred_check
        %p1385 = pneg %p171
      $region46: #{tpu_custom_call.1} parent=43 // pred_check_branch
        %1387 = sbr.rel (%p1385) target = $region48
      $region47: #{tpu_custom_call.1} parent=43 // pred_region
        %s1388 = smul.u32 16, %s17
      $region48: #{tpu_custom_call.1} parent=43 // pred_fallthru
        _
    $region44: #{tpu_custom_call.1} parent=5 // pred_fallthru
      _
    %p1389 = scmp.le.s32.totalorder 2, %s12
    // Predicated region
    $region49: #{tpu_custom_call.1} parent=5 // pred_check
      %p1390 = pneg %p1389
    $region50: #{tpu_custom_call.1} parent=5 // pred_check_branch
      %1392 = sbr.rel (%p1390) target = $region52
    $region51: #{tpu_custom_call.1} parent=5 // pred_region
      %s1393 = ssub.s32 %s12, 2
      // Predicated region
      $region53: #{tpu_custom_call.1} parent=51 // pred_check
        %p1394 = pneg %p177
      $region54: #{tpu_custom_call.1} parent=51 // pred_check_branch
        %1396 = sbr.rel (%p1394) target = $region56
      $region55: #{tpu_custom_call.1} parent=51 // pred_region
        %s1397 = smul.u32 16, %s18
        %p1398 = scmp.lt.s32.totalorder %s1397, 31
        %s1399 = scalar_select %p1398, %s1397, 31
        %s1400 = smul.addr %s1399, 8
        %s1401 = scalar_lea.vmem %s6, %s1400
      $region56: #{tpu_custom_call.1} parent=51 // pred_fallthru
        _
    $region52: #{tpu_custom_call.1} parent=5 // pred_fallthru
      _
  $region6: #{tpu_custom_call.1} parent=0 // loop_footer
    %s16 = sadd.s32 1, %s12
  $region7: #{tpu_custom_call.1} parent=0 // loop_footer_branch
    %11 = sbr.rel target = $region3
  $region8: #{tpu_custom_call.1} parent=0 // loop_exit
    _

</llo_original>
